<compile_context>
chip_gen: v5e
topology: v5e:2x2
jax: 0.10.0
libtpu: 0.0.40
codegen_flags: <defaults>
</compile_context>

<pallas_src>
from functools import partial

import jax
import jax.numpy as jnp
from jax.experimental import pallas as pl
from jax.experimental.pallas import tpu as pltpu


# ----------------------------------------------------------------------------
# Kernels
# ----------------------------------------------------------------------------

def _mixing_kernel_flat(x_ref, v_ref, c_ref, o_ref, *, time_len, input_dim):
    # x_ref: (block_rows, T*D) VMEM  -- flattened (time, feature) on the lane axis
    # v_ref: (1, T*D)          VMEM  -- fused BN-scale * Linear weight per lane
    # c_ref: (1,)              SMEM  -- fused scalar: sum_t(shift[t]*w[t]) + bias
    # o_ref: (block_rows, T*D) VMEM
    T, D = time_len, input_dim
    x = x_ref[...]
    acc = x * v_ref[...]                             # VPU elementwise, lane-dense

    # Sum over the T groups of D lanes via XLU circular rotations.  After the
    # reduction every lane l = t*D + d holds z[b, d] = sum_t' x[b, t', d]*v[t'],
    # i.e. the result is already broadcast back along the time axis.
    if T & (T - 1) == 0:                             # power of two: log2(T) rolls
        s = D
        while s < T * D:
            acc = acc + pltpu.roll(acc, shift=s, axis=1)
            s *= 2
    else:                                            # generic small T: T-1 rolls
        base = acc
        for j in range(1, T):
            acc = acc + pltpu.roll(base, shift=j * D, axis=1)

    z = jnp.maximum(acc + c_ref[0], 0.0)             # fused shift term + ReLU
    o_ref[...] = x + z                               # residual (dropout = identity)


def _mixing_kernel_3d(x_ref, v_ref, c_ref, o_ref):
    # Fallback layout: x_ref (block_b, T, D_pad); T on sublanes, D_pad on lanes.
    x = x_ref[...]
    acc = jnp.sum(x * v_ref[...], axis=1, keepdims=True)   # sublane reduce over T
    z = jnp.maximum(acc + c_ref[0], 0.0)                    # (block_b, 1, D_pad)
    o_ref[...] = x + z                                      # broadcast over time


# ----------------------------------------------------------------------------
# Wrapper
# ----------------------------------------------------------------------------

def _block_budget_bytes():
    """Per-grid-step block budget (input block; ~4x is live with double
    buffering of input + output). Generation-aware: stay inside the default
    scoped-VMEM limit everywhere (16 MiB v5e, 32 MiB v6e/v7x)."""
    try:
        kind = jax.devices()[0].device_kind.lower()
    except Exception:
        kind = ""
    if "v6" in kind or "v7" in kind:
        return 6 * 1024 * 1024      # 4x6 = 24 MiB live < 32 MiB scoped default
    return 3 * 1024 * 1024          # 4x3 = 12 MiB live < 16 MiB scoped default


def _pick_block_rows(B, row_bytes, budget, align=8):
    """Rows per grid step: as big as the VMEM budget allows, but keep >= 4 grid
    steps (>= 2 per v7x TensorCore + pipeline overlap) when B is large enough
    to do so with `align`-row blocks."""
    target = max(align, budget // max(1, row_bytes))
    if B >= 4 * align:
        target = min(target, pl.cdiv(B, 4))
    if target >= B:
        return B
    return max(align, (target // align) * align)


def mixing(x, gamma, beta, run_mean, run_var, eps, w_t, b_t, *,
           block_rows=None, donate_x=False):
    """x: (B, T, D) float32; returns (B, T, D)."""
    B, T, D = x.shape
    x = x.astype(jnp.float32)

    # Fold BN (eval mode, running statistics) into the Linear(time_len->1) weights.
    inv_std = 1.0 / jnp.sqrt(run_var.astype(jnp.float32) + eps)
    scale = gamma.astype(jnp.float32) * inv_std                       # (T,)
    shift = beta.astype(jnp.float32) - run_mean.astype(jnp.float32) * scale
    w = w_t.astype(jnp.float32)
    v = scale * w                                                     # (T,)
    c_arr = (jnp.sum(shift * w) + b_t.astype(jnp.float32)[0]).reshape(1)

    budget = _block_budget_bytes()
    TD = T * D
    pow2_T = (T & (T - 1)) == 0
    use_flat = (
        TD % 128 == 0                        # lane-dense rows -> unmasked vst
        and 8 * TD * 4 <= budget             # >= 8 sublane-aligned rows per block
        and (pow2_T or T <= 8 or D % 128 != 0)   # keep XLU roll count bounded (v7x)
    )

    # Batch axis is fully parallel.  If profiling shows one v7x TensorCore
    # idle, switch to (pltpu.CORE_PARALLEL,).
    semantics = ("parallel",)
    io_alias = {0: 0} if donate_x else {}

    if use_flat:
        x_flat = x.reshape(B, TD)                  # contiguous -> free reshape
        v_rep = jnp.repeat(v, D).reshape(1, TD)    # v_rep[t*D + d] = v[t]
        if block_rows is None:
            block_rows = _pick_block_rows(B, TD * 4, budget, align=8)
        grid = (pl.cdiv(B, block_rows),)
        out = pl.pallas_call(
            partial(_mixing_kernel_flat, time_len=T, input_dim=D),
            out_shape=jax.ShapeDtypeStruct((B, TD), jnp.float32),
            grid_spec=pl.GridSpec(
                grid=grid,
                in_specs=[
                    pl.BlockSpec((block_rows, TD), lambda i: (i, 0)),
                    pl.BlockSpec((1, TD), lambda i: (0, 0)),
                    pl.BlockSpec(memory_space=pltpu.MemorySpace.SMEM),
                ],
                out_specs=pl.BlockSpec((block_rows, TD), lambda i: (i, 0)),
            ),
            compiler_params=pltpu.CompilerParams(dimension_semantics=semantics),
            input_output_aliases=io_alias,
        )(x_flat, v_rep, c_arr)
        return out.reshape(B, T, D)

    # Fallback layout: (B, T, D_pad), D zero-padded to a multiple of 128 so the
    # lane axis stays dense; the time reduction is a sublane reduce (no rolls).
    D_pad = ((D + 127) // 128) * 128
    x_pad = x if D_pad == D else jnp.pad(x, ((0, 0), (0, 0), (0, D_pad - D)))
    v3 = jnp.broadcast_to(v[None, :, None], (1, T, D_pad))
    if block_rows is None:
        block_rows = _pick_block_rows(B, T * D_pad * 4, budget, align=1)
    grid = (pl.cdiv(B, block_rows),)
    out = pl.pallas_call(
        _mixing_kernel_3d,
        out_shape=jax.ShapeDtypeStruct((B, T, D_pad), jnp.float32),
        grid_spec=pl.GridSpec(
            grid=grid,
            in_specs=[
                pl.BlockSpec((block_rows, T, D_pad), lambda i: (i, 0, 0)),
                pl.BlockSpec((1, T, D_pad), lambda i: (0, 0, 0)),
                pl.BlockSpec(memory_space=pltpu.MemorySpace.SMEM),
            ],
            out_specs=pl.BlockSpec((block_rows, T, D_pad), lambda i: (i, 0, 0)),
        ),
        compiler_params=pltpu.CompilerParams(dimension_semantics=semantics),
        input_output_aliases=io_alias,
    )(x_pad, v3, c_arr)
    return out[:, :, :D]


# ----------------------------------------------------------------------------
# Demo / self-check
# ----------------------------------------------------------------------------

if __name__ == "__main__":

    def reference(x, gamma, beta, run_mean, run_var, eps, w_t, b_t):
        # Pure-JAX reference (eval-mode BN + identity dropout).
        inv_std = 1.0 / jnp.sqrt(run_var + eps)
        xb = ((x - run_mean[None, :, None]) * inv_std[None, :, None]
              * gamma[None, :, None] + beta[None, :, None])
        z = jnp.einsum("btd,t->bd", xb, w_t) + b_t[0]
        z = jnp.maximum(z, 0.0)
        return x + z[:, None, :]

    def make_inputs(key, B, T, D):
        k1, k2, k3, k4, k5, k6, k7 = jax.random.split(key, 7)
        x = jax.random.normal(k1, (B, T, D), jnp.float32)
        # BatchNorm2d(time_len, input_dim): num_features = T, eps = input_dim
        # (faithfully reproduces the upstream quirk).
        gamma = 1.0 + 0.1 * jax.random.normal(k2, (T,), jnp.float32)
        beta = 0.1 * jax.random.normal(k3, (T,), jnp.float32)
        run_mean = 0.1 * jax.random.normal(k4, (T,), jnp.float32)
        run_var = jnp.abs(jax.random.normal(k5, (T,), jnp.float32)) + 0.5
        eps = float(D)
        # nn.Linear(time_len, 1): weight (1, T), bias (1,)
        bound = 1.0 / (T ** 0.5)
        w_t = jax.random.uniform(k6, (T,), jnp.float32, minval=-bound, maxval=bound)
        b_t = jax.random.uniform(k7, (1,), jnp.float32, minval=-bound, maxval=bound)
        return x, gamma, beta, run_mean, run_var, eps, w_t, b_t

    key = jax.random.PRNGKey(0)
    k_a, k_b = jax.random.split(key)

    # Case 1: lane-dense flat layout (T*D = 128, pow2 T -> roll-tree reduction).
    args = make_inputs(k_a, 4, 8, 16)
    out = jax.block_until_ready(mixing(*args))
    ref = reference(*args)
    assert out.shape == ref.shape
    assert jnp.allclose(out, ref, atol=1e-5, rtol=1e-5), "flat-layout mismatch"

    # Case 2: fallback (B, T, D_pad) layout (T*D = 160, not a multiple of 128).
    args = make_inputs(k_b, 4, 8, 20)
    out = jax.block_until_ready(mixing(*args))
    ref = reference(*args)
    assert out.shape == ref.shape
    assert jnp.allclose(out, ref, atol=1e-5, rtol=1e-5), "3d-layout mismatch"

    print("KERNEL_OK")
</pallas_src>

<mosaic_0001>
module attributes {stable_mosaic.version = 11 : i64} {
  func.func @_mixing_kernel_flat(%arg0: i32, %arg1: memref<4x128xf32, #tpu.memory_space<vmem>>, %arg2: memref<1x128xf32, #tpu.memory_space<vmem>>, %arg3: memref<1xf32, #tpu.memory_space<smem>>, %arg4: memref<4x128xf32, #tpu.memory_space<vmem>>) attributes {dimension_semantics = [#tpu.dimension_semantics<parallel>], iteration_bounds = array<i64: 1>, scalar_prefetch = 0 : i64, scratch_operands = 0 : i64, tpu.core_type = #tpu.core_type<tc>, window_params = [{transform_indices = @transform_0, window_bounds = array<i64: 4, 128>}, {pipeline_mode = #tpu.pipeline_mode<synchronous>, transform_indices = @transform_1, window_bounds = array<i64: 1, 128>}, {transform_indices = @transform_2, window_bounds = array<i64: 1>}, {transform_indices = @transform_3, window_bounds = array<i64: 4, 128>}]} {
    %c0 = arith.constant 0 : index
    %c0_0 = arith.constant 0 : index
    %0 = vector.load %arg1[%c0, %c0_0] : memref<4x128xf32, #tpu.memory_space<vmem>>, vector<4x128xf32>
    %c0_1 = arith.constant 0 : index
    %c0_2 = arith.constant 0 : index
    %1 = vector.load %arg2[%c0_1, %c0_2] : memref<1x128xf32, #tpu.memory_space<vmem>>, vector<1x128xf32>
    %2 = vector.broadcast %1 : vector<1x128xf32> to vector<4x128xf32>
    %3 = arith.mulf %0, %2 : vector<4x128xf32>
    %c16_i32 = arith.constant 16 : i32
    %4 = tpu.dynamic_rotate %3 by %c16_i32 dim 1 : vector<4x128xf32>, i32 -> vector<4x128xf32>
    %5 = arith.addf %3, %4 : vector<4x128xf32>
    %c32_i32 = arith.constant 32 : i32
    %6 = tpu.dynamic_rotate %5 by %c32_i32 dim 1 : vector<4x128xf32>, i32 -> vector<4x128xf32>
    %7 = arith.addf %5, %6 : vector<4x128xf32>
    %c64_i32 = arith.constant 64 : i32
    %8 = tpu.dynamic_rotate %7 by %c64_i32 dim 1 : vector<4x128xf32>, i32 -> vector<4x128xf32>
    %9 = arith.addf %7, %8 : vector<4x128xf32>
    %c0_3 = arith.constant 0 : index
    %10 = memref.load %arg3[%c0_3] : memref<1xf32, #tpu.memory_space<smem>>
    %11 = vector.broadcast %10 : f32 to vector<4x128xf32>
    %12 = arith.addf %9, %11 : vector<4x128xf32>
    %cst = arith.constant 0.000000e+00 : f32
    %13 = vector.broadcast %cst : f32 to vector<4x128xf32>
    %14 = arith.maximumf %12, %13 : vector<4x128xf32>
    %15 = arith.addf %0, %14 : vector<4x128xf32>
    %c0_4 = arith.constant 0 : index
    %c0_5 = arith.constant 0 : index
    %16 = vector.load %arg4[%c0_4, %c0_5] : memref<4x128xf32, #tpu.memory_space<vmem>>, vector<4x128xf32>
    tpu.vector_store %arg4[%c0_4, %c0_5], %15 {strides = array<i32>} : memref<4x128xf32, #tpu.memory_space<vmem>>, vector<4x128xf32>,
    return
  }
  func.func @transform_0(%arg0: i32) -> (i32, i32) {
    %c0_i32 = arith.constant 0 : i32
    %c0_i32_0 = arith.constant 0 : i32
    return %arg0, %c0_i32 : i32, i32
  }
  func.func @transform_1(%arg0: i32) -> (i32, i32) {
    %c0_i32 = arith.constant 0 : i32
    %c0_i32_0 = arith.constant 0 : i32
    %c0_i32_1 = arith.constant 0 : i32
    return %c0_i32, %c0_i32_0 : i32, i32
  }
  func.func @transform_2(%arg0: i32) -> i32 {
    %c0_i32 = arith.constant 0 : i32
    %c0_i32_0 = arith.constant 0 : i32
    return %c0_i32 : i32
  }
  func.func @transform_3(%arg0: i32) -> (i32, i32) {
    %c0_i32 = arith.constant 0 : i32
    %c0_i32_0 = arith.constant 0 : i32
    return %arg0, %c0_i32 : i32, i32
  }
}

</mosaic_0001>

<llo_original>
// kernel: tpu_custom_call.1
$region0: #{tpu_custom_call.1}
  #allocation0 [shape = 'u32[]', space=smem, size = 0x4, offset = 0x4, fixed_abs, tag = 'smem constant byte address 0x4 - core index']
  #allocation1 [shape = 'u32[72,128]{1,0:T(1,128)}', space=vmem, size = 0x9000, scoped, tag = 'internal scratch']
  #allocation2 [shape = 'f32[1]{0:T(128)S(6)}', space=smem, size = 0x200, scoped, tag = 'scoped memory for tpu_custom_call.1']
  %s0 = inlined_call_operand.hbm [shape: f32[4,128], index: 0, kind: input, shape index: {}]
  %s1 = inlined_call_operand.vmem [shape: f32[1,128], index: 1, kind: input, shape index: {}]
  %s2 = inlined_call_operand.<no memory space> [shape: f32[1], index: 2, kind: input, shape index: {}]
  %s3 = inlined_call_operand.hbm [shape: f32[4,128], index: 3, kind: output, shape index: {}]
  %s4 = sld [smem:[#allocation0]]
  $region26: #{tpu_custom_call.1} parent=0
    _
  %s6 = ssub.s32 1, %s4
  %s7 = scalar_select 0, %s6, %s4
  %8 = sst [smem:[#allocation2]] %s2
  $region1: #{tpu_custom_call.1} parent=0
    #allocation3 [shape = 'u8[2048]{0}', space=vmem, size = 0x800, scoped, tag = 'input window, operand 0, single buffered']
    #allocation4 [shape = 's32[1]{0}', space=sflag, size = 0x4, scoped, tag = 'scoped memory for tpu_custom_call.1']
    #allocation5 [shape = 's32[1]{0}', space=sflag, size = 0x4, scoped, tag = 'scoped memory for tpu_custom_call.1']
    #allocation6 [shape = 'u8[2048]{0}', space=vmem, size = 0x800, scoped, tag = 'output window, operand 0, single buffered']
    %9 = vsyncpa [#allocation4], 0
    %10 = vsyncpa [#allocation5], 0
    // Predicated region
    $region2: #{tpu_custom_call.1} parent=1 // pred_check
      _
    $region3: #{tpu_custom_call.1} parent=1 // pred_check_branch
      %12 = sbr.rel (0) target = $region5
    $region4: #{tpu_custom_call.1} parent=1 // pred_region
      %14 = vsyncadd [#allocation4], 0
      %s16 = sshll.u32 %s0, 4
      %s17 = int_to_ptr.hbm [resolvable:$true] %s16
      %s18 = sshll.u32 [#allocation3], 4
      %s19 = int_to_ptr.vmem [resolvable:$true] %s18
      %21 = dma.hbm_to_vmem [thread:$0]  %s17, 64, %s19, [#allocation4]
    $region5: #{tpu_custom_call.1} parent=1 // pred_fallthru
      _
    // Predicated region
    $region6: #{tpu_custom_call.1} parent=1 // pred_check
      _
    $region7: #{tpu_custom_call.1} parent=1 // pred_check_branch
      %23 = sbr.rel (0) target = $region9
    $region8: #{tpu_custom_call.1} parent=1 // pred_region
      _
    $region9: #{tpu_custom_call.1} parent=1 // pred_fallthru
      _
    // Predicated region
    $region10: #{tpu_custom_call.1} parent=1 // pred_check
      _
    $region11: #{tpu_custom_call.1} parent=1 // pred_check_branch
      %25 = sbr.rel (0) target = $region13
    $region12: #{tpu_custom_call.1} parent=1 // pred_region
      _
    $region13: #{tpu_custom_call.1} parent=1 // pred_fallthru
      _
    // Predicated region
    $region14: #{tpu_custom_call.1} parent=1 // pred_check
      _
    $region15: #{tpu_custom_call.1} parent=1 // pred_check_branch
      %27 = sbr.rel (0) target = $region17
    $region16: #{tpu_custom_call.1} parent=1 // pred_region
      %29 = dma.done [#allocation4], 64
    $region17: #{tpu_custom_call.1} parent=1 // pred_fallthru
      _
    %v30 = vld [vmem:[#allocation3] sm:$0xf]
    %v31 = vld [vmem:[%s1] sm:$0x1]
    %v33 = vperm.slane %v31, 0
    %v35 = vmul.f32 %v30, %v33
    %36 = vrot.lane.b32.xlu0 %v35, 16
    %v37 = vpop.permute.xlu0 %36
    %v38 = vadd.f32 %v35, %v37
    %39 = vrot.lane.b32.xlu0 %v38, 32
    %v40 = vpop.permute.xlu0 %39
    %v41 = vadd.f32 %v38, %v40
    %42 = vrot.lane.b32.xlu0 %v41, 64
    %v43 = vpop.permute.xlu0 %42
    %v44 = vadd.f32 %v41, %v43
    %s45 = sld [smem:[#allocation2]]
    %v46 = vstv %s45
    %v47 = vadd.f32 %v44, %v46
    %v48 = vmax.f32 %v47, 0.0
    %v49 = vadd.f32 %v30, %v48
    %50 = vst [vmem:[#allocation6] sm:$0xf] %v49
    // Predicated region
    $region18: #{tpu_custom_call.1} parent=1 // pred_check
      _
    $region19: #{tpu_custom_call.1} parent=1 // pred_check_branch
      %52 = sbr.rel (0) target = $region21
    $region20: #{tpu_custom_call.1} parent=1 // pred_region
      %54 = vsyncadd [#allocation5], 0
      %s56 = sshll.u32 [#allocation6], 4
      %s57 = int_to_ptr.vmem [resolvable:$true] %s56
      %s58 = sshll.u32 %s3, 4
      %s59 = int_to_ptr.hbm [resolvable:$true] %s58
      %61 = dma.vmem_to_hbm [thread:$0]  %s57, 64, %s59, [#allocation5]
    $region21: #{tpu_custom_call.1} parent=1 // pred_fallthru
      _
    // Predicated region
    $region22: #{tpu_custom_call.1} parent=1 // pred_check
      _
    $region23: #{tpu_custom_call.1} parent=1 // pred_check_branch
      %63 = sbr.rel (0) target = $region25
    $region24: #{tpu_custom_call.1} parent=1 // pred_region
      %65 = dma.done [#allocation5], 64
    $region25: #{tpu_custom_call.1} parent=1 // pred_fallthru
      _
    %66 = vsyncpa [#allocation4], 1
    %67 = vsyncpa [#allocation5], 1

</llo_original>
